<compile_context>
chip_gen: v7x
topology: tpu7x:2x2x1
jax: 0.10.0
libtpu: 0.0.40
codegen_flags: <defaults>
</compile_context>

<pallas_src>
import jax
import jax.numpy as jnp
from jax.experimental import pallas as pl
from jax.experimental.pallas import tpu as pltpu


# ---------------------------------------------------------------------------
# Kernel
# ---------------------------------------------------------------------------
def _bear_aby_kernel(x_ref, w1t_ref, w2t_ref, o_ref):
    x = x_ref[...]                       # [TB, inp]      (streamed)
    w1t = w1t_ref[...]                   # [inp, k]       (resident, canonical [K, N])
    w2t = w2t_ref[...]                   # [k, inp]       (resident, canonical [K, N])

    # h = x @ W1^T  (canonical [M,K] x [K,N] -> no RHS transpose in the loop body)
    h = jnp.dot(x, w1t, preferred_element_type=jnp.float32)          # [TB, k]
    # Match the module's layer-to-layer activation dtype (no-op for f32).
    h = h.astype(x.dtype)

    # out = h @ W2^T
    out = jnp.dot(h, w2t, preferred_element_type=jnp.float32)        # [TB, inp]
    o_ref[...] = out.astype(o_ref.dtype)


# ---------------------------------------------------------------------------
# Tiling / VMEM planning
# ---------------------------------------------------------------------------
def _cdiv(a, b):
    return -(-a // b)


def _round_up(a, m):
    return _cdiv(a, m) * m


def _vmem_capacity_bytes():
    # Per-TC VMEM capacity: 128 MiB on v5e/v6e, 64 MiB on v7x.
    try:
        return int(pltpu.get_tpu_info().vmem_capacity_bytes)
    except Exception:
        return 64 << 20  # conservative (v7x per-TC)


def _vmem_plan(B, inp, k, x_dtype, w_dtype, out_dtype):
    """Returns (TB, vmem_limit_bytes) derived from the per-generation budget."""
    x_it = jnp.dtype(x_dtype).itemsize
    w_it = jnp.dtype(w_dtype).itemsize
    o_it = jnp.dtype(out_dtype).itemsize

    # Sublane packing: 8 rows (f32), 16 rows (bf16), 32 rows (int8/fp8).
    rows_align = max(8, 32 // min(x_it, o_it))

    phys = _vmem_capacity_bytes()
    budget = int(phys * 0.7)                       # ~30% headroom

    # Resident weights: count x2 for the pipeline's input buffering; on v7x
    # each TC carries its own copy against its 64 MiB, which this models.
    weight_bytes = 2 * (2 * inp * k * w_it)

    # Per batch-row streaming footprint: 2 double-buffered x tiles +
    # 2 double-buffered out tiles + f32 compute live range (out row + h row).
    per_row = 2 * inp * x_it + 2 * inp * o_it + inp * 4 + max(k, 128) * 4

    if B <= rows_align:
        tb = B                                     # full-extent block
    else:
        avail = max(budget - weight_bytes, per_row * rows_align)
        tb = max(rows_align, (avail // per_row) // rows_align * rows_align)
        # Keep per-step DMA granularity sane (~8 MiB of x per tile).
        dma_cap = max(rows_align,
                      ((8 << 20) // max(1, inp * x_it)) // rows_align * rows_align)
        tb = min(tb, dma_cap)
        # Guarantee >= 2 grid steps: v7x megacore sharding + DMA/compute overlap.
        tb = min(tb, _round_up(_cdiv(B, 2), rows_align))
        tb = max(rows_align, tb)

    est_bytes = weight_bytes + tb * per_row
    vmem_limit = int(min(phys, max(int(est_bytes * 1.4), 32 << 20)))
    return tb, vmem_limit


# ---------------------------------------------------------------------------
# Wrapper
# ---------------------------------------------------------------------------
def bear_aby_forward(x, w1, w2, *, force_pallas=False):
    """x: [B, inp], w1: ln1.weight [k, inp], w2: ln2.weight [inp, k]."""
    B, inp = x.shape
    k = w1.shape[0]
    assert w1.shape == (k, inp) and w2.shape == (inp, k)

    # Toy-size fallback: pallas_call launch + per-step overhead dominates below
    # a couple of MiB of streamed traffic; let XLA fuse the two tiny dots.
    if not force_pallas and (x.size * jnp.dtype(x.dtype).itemsize) < (2 << 20):
        return ((x @ w1.T) @ w2.T).astype(x.dtype)

    # One-time tiny transposes -> MXU-canonical [K, N] resident operands.
    w1t = w1.T                                    # [inp, k]
    w2t = w2.T                                    # [k, inp]

    # Lane-dense inp (last dim of x/out tiles must be a 128-multiple for
    # unmasked vector stores). Zero-padding is exact: padded columns of x and
    # padded rows/cols of the weights contribute 0, padded outputs are sliced.
    LANE = 128
    inp_pad = _round_up(inp, LANE)
    if inp_pad != inp:
        x = jnp.pad(x, ((0, 0), (0, inp_pad - inp)))
        w1t = jnp.pad(w1t, ((0, inp_pad - inp), (0, 0)))
        w2t = jnp.pad(w2t, ((0, 0), (0, inp_pad - inp)))

    out_dtype = x.dtype
    TB, vmem_limit = _vmem_plan(B, inp_pad, k, x.dtype, w1t.dtype, out_dtype)
    grid = (pl.cdiv(B, TB),)

    x_it = jnp.dtype(x.dtype).itemsize
    w_it = jnp.dtype(w1t.dtype).itemsize
    o_it = jnp.dtype(out_dtype).itemsize
    cost = pl.CostEstimate(
        flops=4 * B * inp_pad * k,
        transcendentals=0,
        bytes_accessed=(B * inp_pad * (x_it + o_it) + 2 * inp_pad * k * w_it),
    )

    out = pl.pallas_call(
        _bear_aby_kernel,
        out_shape=jax.ShapeDtypeStruct((B, inp_pad), out_dtype),
        grid_spec=pltpu.PrefetchScalarGridSpec(
            num_scalar_prefetch=0,
            grid=grid,
            in_specs=[
                # x streams per batch tile.
                pl.BlockSpec((TB, inp_pad), lambda i: (i, 0)),
                # Weights stay resident in VMEM across the whole grid.
                pl.BlockSpec((inp_pad, k), lambda i: (0, 0)),
                pl.BlockSpec((k, inp_pad), lambda i: (0, 0)),
            ],
            out_specs=pl.BlockSpec((TB, inp_pad), lambda i: (i, 0)),
        ),
        compiler_params=pltpu.CompilerParams(
            # Batch tiles are independent -> shard across TCs on v7x.
            dimension_semantics=("parallel",),
            vmem_limit_bytes=vmem_limit,
        ),
        cost_estimate=cost,
    )(x, w1t, w2t)

    if inp_pad != inp:
        out = out[:, :inp]
    return out


# ---------------------------------------------------------------------------
# Demo / correctness check
# ---------------------------------------------------------------------------
if __name__ == "__main__":
    # Small shapes consistent with the module: lane-dense inp=128, bottleneck
    # k=4, batch=64 (enough rows for >=2 grid tiles).
    B, inp, k = 64, 128, 4

    key = jax.random.PRNGKey(0)
    kx, k1, k2 = jax.random.split(key, 3)

    x = jax.random.normal(kx, (B, inp), dtype=jnp.float32)
    # Deterministic synthetic weights (PyTorch nn.Linear shapes: [out, in]).
    bound1 = 1.0 / (inp ** 0.5)
    bound2 = 1.0 / (k ** 0.5)
    w1 = jax.random.uniform(k1, (k, inp), jnp.float32, -bound1, bound1)   # ln1.weight
    w2 = jax.random.uniform(k2, (inp, k), jnp.float32, -bound2, bound2)   # ln2.weight

    # f32 path: bit-faithful to the PyTorch reference ordering.
    out = jax.block_until_ready(bear_aby_forward(x, w1, w2, force_pallas=True))
    ref = (x @ w1.T) @ w2.T
    assert out.shape == (B, inp)
    assert jnp.allclose(out, ref, atol=1e-5, rtol=1e-5)

    # bf16 I/O path (recommended at real sizes: halves HBM traffic, f32 accum).
    out_bf16 = jax.block_until_ready(
        bear_aby_forward(x.astype(jnp.bfloat16),
                         w1.astype(jnp.bfloat16),
                         w2.astype(jnp.bfloat16),
                         force_pallas=True))
    assert out_bf16.shape == (B, inp) and out_bf16.dtype == jnp.bfloat16
    assert jnp.allclose(out_bf16.astype(jnp.float32), ref, atol=1e-1, rtol=1e-1)

    print("KERNEL_OK")
</pallas_src>

<mosaic_0001>
module attributes {stable_mosaic.version = 11 : i64} {
  func.func @_bear_aby_kernel(%arg0: i32, %arg1: memref<32x128xf32, #tpu.memory_space<vmem>>, %arg2: memref<128x4xf32, #tpu.memory_space<vmem>>, %arg3: memref<4x128xf32, #tpu.memory_space<vmem>>, %arg4: memref<32x128xf32, #tpu.memory_space<vmem>>) attributes {dimension_semantics = [#tpu.dimension_semantics<parallel>], iteration_bounds = array<i64: 2>, scalar_prefetch = 0 : i64, scratch_operands = 0 : i64, tpu.core_type = #tpu.core_type<tc>, window_params = [{transform_indices = @transform_0, window_bounds = array<i64: 32, 128>}, {pipeline_mode = #tpu.pipeline_mode<synchronous>, transform_indices = @transform_1, window_bounds = array<i64: 128, 4>}, {pipeline_mode = #tpu.pipeline_mode<synchronous>, transform_indices = @transform_2, window_bounds = array<i64: 4, 128>}, {transform_indices = @transform_3, window_bounds = array<i64: 32, 128>}]} {
    %c0 = arith.constant 0 : index
    %c0_0 = arith.constant 0 : index
    %0 = vector.load %arg1[%c0, %c0_0] : memref<32x128xf32, #tpu.memory_space<vmem>>, vector<32x128xf32>
    %c0_1 = arith.constant 0 : index
    %c0_2 = arith.constant 0 : index
    %1 = vector.load %arg2[%c0_1, %c0_2] : memref<128x4xf32, #tpu.memory_space<vmem>>, vector<128x4xf32>
    %c0_3 = arith.constant 0 : index
    %c0_4 = arith.constant 0 : index
    %2 = vector.load %arg3[%c0_3, %c0_4] : memref<4x128xf32, #tpu.memory_space<vmem>>, vector<4x128xf32>
    %cst = arith.constant dense<0.000000e+00> : vector<32x4xf32>
    %3 = tpu.matmul %0, %1, %cst {dimension_numbers = #tpu.dot_dimension_numbers<[1], [0], [0], [1], [0, 0, 1, 1], [], []>} : vector<32x128xf32>, vector<128x4xf32>, vector<32x4xf32> -> vector<32x4xf32>
    %cst_5 = arith.constant dense<0.000000e+00> : vector<32x128xf32>
    %4 = tpu.matmul %3, %2, %cst_5 {dimension_numbers = #tpu.dot_dimension_numbers<[1], [0], [0], [1], [0, 0, 1, 1], [], []>} : vector<32x4xf32>, vector<4x128xf32>, vector<32x128xf32> -> vector<32x128xf32>
    %c0_6 = arith.constant 0 : index
    %c0_7 = arith.constant 0 : index
    %5 = vector.load %arg4[%c0_6, %c0_7] : memref<32x128xf32, #tpu.memory_space<vmem>>, vector<32x128xf32>
    tpu.vector_store %arg4[%c0_6, %c0_7], %4 {strides = array<i32>} : memref<32x128xf32, #tpu.memory_space<vmem>>, vector<32x128xf32>,
    return
  }
  func.func @transform_0(%arg0: i32) -> (i32, i32) {
    %c0_i32 = arith.constant 0 : i32
    %c0_i32_0 = arith.constant 0 : i32
    return %arg0, %c0_i32 : i32, i32
  }
  func.func @transform_1(%arg0: i32) -> (i32, i32) {
    %c0_i32 = arith.constant 0 : i32
    %c0_i32_0 = arith.constant 0 : i32
    %c0_i32_1 = arith.constant 0 : i32
    return %c0_i32, %c0_i32_0 : i32, i32
  }
  func.func @transform_2(%arg0: i32) -> (i32, i32) {
    %c0_i32 = arith.constant 0 : i32
    %c0_i32_0 = arith.constant 0 : i32
    %c0_i32_1 = arith.constant 0 : i32
    return %c0_i32, %c0_i32_0 : i32, i32
  }
  func.func @transform_3(%arg0: i32) -> (i32, i32) {
    %c0_i32 = arith.constant 0 : i32
    %c0_i32_0 = arith.constant 0 : i32
    return %arg0, %c0_i32 : i32, i32
  }
}

</mosaic_0001>

<llo_original>
// kernel: tpu_custom_call.1
$region0: #{tpu_custom_call.1}
  #allocation0 [shape = 'u32[]', space=smem, size = 0x4, offset = 0x4, fixed_abs, tag = 'smem constant byte address 0x4 - core index']
  #allocation1 [shape = 'u32[144,128]{1,0:T(1,128)}', space=vmem, size = 0x12000, scoped, tag = 'internal scratch']
  %s0 = inlined_call_operand.vmem [shape: f32[64,128], index: 0, kind: input, shape index: {}]
  %s1 = inlined_call_operand.vmem [shape: f32[128,4], index: 1, kind: input, shape index: {}]
  %s2 = inlined_call_operand.vmem [shape: f32[4,128], index: 2, kind: input, shape index: {}]
  %s3 = inlined_call_operand.hbm [shape: f32[64,128], index: 3, kind: output, shape index: {}]
  %s4 = sld [smem:[#allocation0]]
  $region45: #{tpu_custom_call.1} parent=0
    _
  %s6 = ssub.s32 1, %s4
  %s7 = scalar_select 0, %s6, %s4
  $region1: #{tpu_custom_call.1} parent=0
    #allocation2 [shape = 'u8[32768]{0}', space=vmem, size = 0x8000, scoped, tag = 'output window, operand 0']
    #allocation3 [shape = 's32[2]{0}', space=sflag, size = 0x8, scoped, tag = 'scoped memory for tpu_custom_call.1']
    %8 = vsyncpa [#allocation3], 0
    %s9 = scalar_lea.sflag [#allocation3], 1
    %10 = vsyncpa %s9, 0
    loop: start=0, step=1, limit=4
    $region2: #{tpu_custom_call.1} parent=1 // loop_pre_header
      _
    $region3: #{tpu_custom_call.1} parent=1 // loop_header
      %s12 = sphi 0, %s16
      %p13 = scmp.ge.s32.totalorder %s12, 4
      %s22 = sphi 0, %s24
      %s25 = sphi 0, %s22
      %s26 = sphi 0, %s25
      %s42 = sphi 0, %s26
      %s46 = sphi 0, %s46
      %s48 = sphi 0, %s46
      %s49 = sphi 0, %s48
      %s63 = sphi 0, %s49
      %s67 = sphi 0, %s67
      %s69 = sphi 0, %s67
      %s70 = sphi 0, %s69
      %s84 = sphi 0, %s70
      %s90 = sphi 0, %s92
      %s93 = sphi 0, %s90
      %s94 = sphi 0, %s93
      %s110 = sphi 0, %s94
    $region4: #{tpu_custom_call.1} parent=1 // loop_header_branch
      %15 = sbr.rel (%p13) target = $region8
    $region5: #{tpu_custom_call.1} parent=1 // loop_body
      %s17 = ssub.s32 %s12, 1
      %s18 = ssub.s32 %s12, 2
      %s19 = sadd.s32 %s12, 1
      %s20 = ssub.s32 %s12, %s19
      %p21 = scmp.eq.s32.totalorder %s20, 0
      %s23 = sadd.s32 %s22, 1
      %s24 = scalar_select %p21, %s22, %s23
      %p27 = pneg %p21
      %p28 = scmp.eq.s32.totalorder %s12, 1
      %p29 = por %p27, %p28
      %p30 = scmp.ne.s32.totalorder %s22, %s25
      %p31 = scmp.eq.s32.totalorder %s12, 0
      %p32 = por %p30, %p31
      %p33 = scmp.ne.s32.totalorder %s22, %s25
      %p34 = scmp.eq.s32.totalorder %s17, 1
      %p35 = por %p33, %p34
      %p36 = scmp.ne.s32.totalorder %s25, %s26
      %p37 = scmp.eq.s32.totalorder %s17, 0
      %p38 = por %p36, %p37
      %p39 = scmp.ne.s32.totalorder %s25, %s26
      %p40 = scmp.eq.s32.totalorder %s18, 1
      %p41 = por %p39, %p40
      %p43 = scmp.ne.s32.totalorder %s26, %s42
      %p44 = scmp.eq.s32.totalorder %s18, 0
      %p45 = por %p43, %p44
      %s47 = sadd.s32 %s46, 1
      %p50 = scmp.eq.s32.totalorder %s12, 1
      %p51 = scmp.ne.s32.totalorder %s46, %s48
      %p52 = scmp.eq.s32.totalorder %s12, 0
      %p53 = por %p51, %p52
      %p54 = scmp.ne.s32.totalorder %s46, %s48
      %p55 = scmp.eq.s32.totalorder %s17, 1
      %p56 = por %p54, %p55
      %p57 = scmp.ne.s32.totalorder %s48, %s49
      %p58 = scmp.eq.s32.totalorder %s17, 0
      %p59 = por %p57, %p58
      %p60 = scmp.ne.s32.totalorder %s48, %s49
      %p61 = scmp.eq.s32.totalorder %s18, 1
      %p62 = por %p60, %p61
      %p64 = scmp.ne.s32.totalorder %s49, %s63
      %p65 = scmp.eq.s32.totalorder %s18, 0
      %p66 = por %p64, %p65
      %s68 = sadd.s32 %s67, 1
      %p71 = scmp.eq.s32.totalorder %s12, 1
      %p72 = scmp.ne.s32.totalorder %s67, %s69
      %p73 = scmp.eq.s32.totalorder %s12, 0
      %p74 = por %p72, %p73
      %p75 = scmp.ne.s32.totalorder %s67, %s69
      %p76 = scmp.eq.s32.totalorder %s17, 1
      %p77 = por %p75, %p76
      %p78 = scmp.ne.s32.totalorder %s69, %s70
      %p79 = scmp.eq.s32.totalorder %s17, 0
      %p80 = por %p78, %p79
      %p81 = scmp.ne.s32.totalorder %s69, %s70
      %p82 = scmp.eq.s32.totalorder %s18, 1
      %p83 = por %p81, %p82
      %p85 = scmp.ne.s32.totalorder %s70, %s84
      %p86 = scmp.eq.s32.totalorder %s18, 0
      %p87 = por %p85, %p86
      %s88 = ssub.s32 %s12, %s19
      %p89 = scmp.eq.s32.totalorder %s88, 0
      %s91 = sadd.s32 %s90, 1
      %s92 = scalar_select %p89, %s90, %s91
      %p95 = pneg %p89
      %p96 = scmp.eq.s32.totalorder %s12, 1
      %p97 = por %p95, %p96
      %p98 = scmp.ne.s32.totalorder %s90, %s93
      %p99 = scmp.eq.s32.totalorder %s12, 0
      %p100 = por %p98, %p99
      %p101 = scmp.ne.s32.totalorder %s90, %s93
      %p102 = scmp.eq.s32.totalorder %s17, 1
      %p103 = por %p101, %p102
      %p104 = scmp.ne.s32.totalorder %s93, %s94
      %p105 = scmp.eq.s32.totalorder %s17, 0
      %p106 = por %p104, %p105
      %p107 = scmp.ne.s32.totalorder %s93, %s94
      %p108 = scmp.eq.s32.totalorder %s18, 1
      %p109 = por %p107, %p108
      %p111 = scmp.ne.s32.totalorder %s94, %s110
      %p112 = scmp.eq.s32.totalorder %s18, 0
      %p113 = por %p111, %p112
      %p114 = scmp.le.s32.totalorder 1, %s12
      %p115 = scmp.lt.s32.totalorder %s12, 3
      %p116 = pnand %p114, %p115
      %p117 = pneg %p116
      // Predicated region
      $region9: #{tpu_custom_call.1} parent=5 // pred_check
        _
      $region10: #{tpu_custom_call.1} parent=5 // pred_check_branch
        %119 = sbr.rel (%p116) target = $region12
      $region11: #{tpu_custom_call.1} parent=5 // pred_region
        %s120 = ssub.s32 %s12, 1
        // Predicated region
        $region13: #{tpu_custom_call.1} parent=11 // pred_check
          %p121 = pneg %p59
        $region14: #{tpu_custom_call.1} parent=11 // pred_check_branch
          %123 = sbr.rel (%p121) target = $region16
        $region15: #{tpu_custom_call.1} parent=11 // pred_region
          _
        $region16: #{tpu_custom_call.1} parent=11 // pred_fallthru
          _
        // Predicated region
        $region17: #{tpu_custom_call.1} parent=11 // pred_check
          %p124 = pneg %p80
        $region18: #{tpu_custom_call.1} parent=11 // pred_check_branch
          %126 = sbr.rel (%p124) target = $region20
        $region19: #{tpu_custom_call.1} parent=11 // pred_region
          _
        $region20: #{tpu_custom_call.1} parent=11 // pred_fallthru
          _
      $region12: #{tpu_custom_call.1} parent=5 // pred_fallthru
        _
      %p127 = scmp.lt.s32.totalorder %s12, 2
      // Predicated region
      $region21: #{tpu_custom_call.1} parent=5 // pred_check
        %p128 = pneg %p127
      $region22: #{tpu_custom_call.1} parent=5 // pred_check_branch
        %130 = sbr.rel (%p128) target = $region24
      $region23: #{tpu_custom_call.1} parent=5 // pred_region
        // Predicated region
        $region25: #{tpu_custom_call.1} parent=23 // pred_check
          %p131 = pneg %p32
        $region26: #{tpu_custom_call.1} parent=23 // pred_check_branch
          %133 = sbr.rel (%p131) target = $region28
        $region27: #{tpu_custom_call.1} parent=23 // pred_region
          %s134 = smul.u32 4, %s12
          %p135 = scmp.lt.s32.totalorder %s134, 7
          %s136 = scalar_select %p135, %s134, 7
          %s137 = smul.addr %s136, 8
          %s138 = scalar_lea.vmem %s0, %s137
          %s139 = smul.u32 4, %s12
        $region28: #{tpu_custom_call.1} parent=23 // pred_fallthru
          _
      $region24: #{tpu_custom_call.1} parent=5 // pred_fallthru
        _
      %p140 = scmp.le.s32.totalorder 1, %s12
      %p141 = scmp.lt.s32.totalorder %s12, 3
      %p142 = pnand %p140, %p141
      %p143 = pneg %p142
      // Predicated region
      $region29: #{tpu_custom_call.1} parent=5 // pred_check
        _
      $region30: #{tpu_custom_call.1} parent=5 // pred_check_branch
        %145 = sbr.rel (%p142) target = $region32
      $region31: #{tpu_custom_call.1} parent=5 // pred_region
        %s146 = ssub.s32 %s12, 1
        %s147 = smul.u32 4, %s17
        %p148 = scmp.lt.s32.totalorder %s147, 7
        %s149 = scalar_select %p148, %s147, 7
        %s150 = smul.addr %s149, 8
        %s151 = scalar_lea.vmem %s0, %s150
        %p152 = pneg %p38
        %p153 = pneg %p35
        %p154 = pneg %p59
        %p155 = pneg %p56
        %p156 = pneg %p80
        %p157 = pneg %p77
        %p158 = pneg %p106
        %p159 = pneg %p103
        %s160 = sand.u32 %s93, 1
        %s161 = scalar_lea.sflag [#allocation3], %s160
        %s162 = sand.u32 %s93, 1
        %s163 = smul.addr %s162, 32
        %s164 = scalar_lea.vmem [#allocation2], %s163
        %s165 = smul.u32 4, %s17
        %p166 = scmp.lt.s32.totalorder %s165, 7
        %s167 = scalar_select %p166, %s165, 7
        %s168 = smul.addr %s167, 8
        %s169 = scalar_lea.vmem %s0, %s168
        %s170 = smul.u32 4, %s17
        %s171 = smul.u32 4, %s17
        %v172 = vld [vmem:[%s169] sm:$0xff]
        %v173 = vld [vmem:[%s169 + $0x8] sm:$0xff]
        %v174 = vld [vmem:[%s169 + $0x10] sm:$0xff]
        %v175 = vld [vmem:[%s169 + $0x18] sm:$0xff]
        %v176 = vld [vmem:[%s1] sm:$0xff]
        %v177 = vld [vmem:[%s1 + $0x8] sm:$0xff]
        %v178 = vld [vmem:[%s1 + $0x10] sm:$0xff]
        %v179 = vld [vmem:[%s1 + $0x18] sm:$0xff]
        %v180 = vld [vmem:[%s1 + $0x20] sm:$0xff]
        %v181 = vld [vmem:[%s1 + $0x28] sm:$0xff]
        %v182 = vld [vmem:[%s1 + $0x30] sm:$0xff]
        %v183 = vld [vmem:[%s1 + $0x38] sm:$0xff]
        %v184 = vld [vmem:[%s1 + $0x40] sm:$0xff]
        %v185 = vld [vmem:[%s1 + $0x48] sm:$0xff]
        %v186 = vld [vmem:[%s1 + $0x50] sm:$0xff]
        %v187 = vld [vmem:[%s1 + $0x58] sm:$0xff]
        %v188 = vld [vmem:[%s1 + $0x60] sm:$0xff]
        %v189 = vld [vmem:[%s1 + $0x68] sm:$0xff]
        %v190 = vld [vmem:[%s1 + $0x70] sm:$0xff]
        %v191 = vld [vmem:[%s1 + $0x78] sm:$0xff]
        %v192 = vld [vmem:[%s2] sm:$0xf]
        %193 = vmatprep.subr.mxu0 0.0
        %194 = vmatpush1.msra.mxu0 %v176
        %195 = vmatprep.subr.mxu0 0.0
        %196 = vmatpush1.msra.mxu0 %v177
        %197 = vmatprep.subr.mxu0 0.0
        %198 = vmatpush1.msra.mxu0 %v178
        %199 = vmatprep.subr.mxu0 0.0
        %200 = vmatpush1.msra.mxu0 %v179
        %201 = vmatprep.subr.mxu0 0.0
        %202 = vmatpush1.msra.mxu0 %v180
        %203 = vmatprep.subr.mxu0 0.0
        %204 = vmatpush1.msra.mxu0 %v181
        %205 = vmatprep.subr.mxu0 0.0
        %206 = vmatpush1.msra.mxu0 %v182
        %207 = vmatprep.subr.mxu0 0.0
        %208 = vmatpush1.msra.mxu0 %v183
        %209 = vmatprep.subr.mxu0 0.0
        %210 = vmatpush1.msra.mxu0 %v184
        %211 = vmatprep.subr.mxu0 0.0
        %212 = vmatpush1.msra.mxu0 %v185
        %213 = vmatprep.subr.mxu0 0.0
        %214 = vmatpush1.msra.mxu0 %v186
        %215 = vmatprep.subr.mxu0 0.0
        %216 = vmatpush1.msra.mxu0 %v187
        %217 = vmatprep.subr.mxu0 0.0
        %218 = vmatpush1.msra.mxu0 %v188
        %219 = vmatprep.subr.mxu0 0.0
        %220 = vmatpush1.msra.mxu0 %v189
        %221 = vmatprep.subr.mxu0 0.0
        %222 = vmatpush1.msra.mxu0 %v190
        %223 = vmatprep.subr.mxu0 0.0
        %224 = vmatpush1.msra.mxu0 %v191
        %225 = vmatprep.subr.mxu0 0.0
        %226 = vmatpush1.msra.mxu0 0.0
        %227 = vmatprep.subr.mxu0 0.0
        %228 = vmatpush1.msra.mxu0 0.0
        %229 = vmatprep.subr.mxu0 0.0
        %230 = vmatpush1.msra.mxu0 0.0
        %231 = vmatprep.subr.mxu0 0.0
        %232 = vmatpush1.msra.mxu0 0.0
        %233 = vmatprep.subr.mxu0 0.0
        %234 = vmatpush1.msra.mxu0 0.0
        %235 = vmatprep.subr.mxu0 0.0
        %236 = vmatpush1.msra.mxu0 0.0
        %237 = vmatprep.subr.mxu0 0.0
        %238 = vmatpush1.msra.mxu0 0.0
        %239 = vmatprep.subr.mxu0 0.0
        %240 = vmatpush1.msra.mxu0 0.0
        %241 = vmatprep.subr.mxu0 0.0
        %242 = vmatpush1.msra.mxu0 0.0
        %243 = vmatprep.subr.mxu0 0.0
        %244 = vmatpush1.msra.mxu0 0.0
        %245 = vmatprep.subr.mxu0 0.0
        %246 = vmatpush1.msra.mxu0 0.0
        %247 = vmatprep.subr.mxu0 0.0
        %248 = vmatpush1.msra.mxu0 0.0
        %249 = vmatprep.subr.mxu0 0.0
        %250 = vmatpush1.msra.mxu0 0.0
        %251 = vmatprep.subr.mxu0 0.0
        %252 = vmatpush1.msra.mxu0 0.0
        %253 = vmatprep.subr.mxu0 0.0
        %254 = vmatpush1.msra.mxu0 0.0
        %255 = vmatprep.subr.mxu0 0.0
        %256 = vmatpush1.msra.mxu0 0.0
        %257 = vmatprep.mubr.f32.mxu0 0.0
        %258 = vmatmul.mubr.f32.gmra.mrb[0].mxu0 %v172
        %v259 = vpop.f32.mrb[0].mxu0
        %v260 = vadd.f32 0.0, %v259
        %v261 = vpop.f32.mrb[0].mxu0
        %262 = vmatprep.mubr.f32.mxu0 0.0
        %263 = vmatmul.mubr.f32.gmra.mrb[0].mxu0 %v173
        %v264 = vpop.f32.mrb[0].mxu0
        %v265 = vadd.f32 0.0, %v264
        %v266 = vpop.f32.mrb[0].mxu0
        %267 = vmatprep.mubr.f32.mxu0 0.0
        %268 = vmatmul.mubr.f32.gmra.mrb[0].mxu0 %v174
        %v269 = vpop.f32.mrb[0].mxu0
        %v270 = vadd.f32 0.0, %v269
        %v271 = vpop.f32.mrb[0].mxu0
        %272 = vmatprep.mubr.f32.mxu0 0.0
        %273 = vmatmul.mubr.f32.gmra.mrb[0].mxu0 %v175
        %v274 = vpop.f32.mrb[0].mxu0
        %v275 = vadd.f32 0.0, %v274
        %v276 = vpop.f32.mrb[0].mxu0
        %277 = vdwg.mxu0
        %vm278 = vcmask 31744
        %v280 = vsel %vm278, %v260, 0
        %v283 = vsel %vm278, %v265, 0
        %v286 = vsel %vm278, %v270, 0
        %v289 = vsel %vm278, %v275, 0
        %vm291 = vcmask 1043456
        %v293 = vsel %vm291, %v192, 0
        %295 = vmatprep.subr.mxu0 0.0
        %296 = vmatpush1.msra.mxu0 %v293
        %297 = vmatprep.subr.mxu0 0.0
        %298 = vmatpush1.msra.mxu0 0.0
        %299 = vmatprep.subr.mxu0 0.0
        %300 = vmatpush1.msra.mxu0 0.0
        %301 = vmatprep.subr.mxu0 0.0
        %302 = vmatpush1.msra.mxu0 0.0
        %303 = vmatprep.subr.mxu0 0.0
        %304 = vmatpush1.msra.mxu0 0.0
        %305 = vmatprep.subr.mxu0 0.0
        %306 = vmatpush1.msra.mxu0 0.0
        %307 = vmatprep.subr.mxu0 0.0
        %308 = vmatpush1.msra.mxu0 0.0
        %309 = vmatprep.subr.mxu0 0.0
        %310 = vmatpush1.msra.mxu0 0.0
        %311 = vmatprep.subr.mxu0 0.0
        %312 = vmatpush1.msra.mxu0 0.0
        %313 = vmatprep.subr.mxu0 0.0
        %314 = vmatpush1.msra.mxu0 0.0
        %315 = vmatprep.subr.mxu0 0.0
        %316 = vmatpush1.msra.mxu0 0.0
        %317 = vmatprep.subr.mxu0 0.0
        %318 = vmatpush1.msra.mxu0 0.0
        %319 = vmatprep.subr.mxu0 0.0
        %320 = vmatpush1.msra.mxu0 0.0
        %321 = vmatprep.subr.mxu0 0.0
        %322 = vmatpush1.msra.mxu0 0.0
        %323 = vmatprep.subr.mxu0 0.0
        %324 = vmatpush1.msra.mxu0 0.0
        %325 = vmatprep.subr.mxu0 0.0
        %326 = vmatpush1.msra.mxu0 0.0
        %327 = vmatprep.subr.mxu0 0.0
        %328 = vmatpush1.msra.mxu0 0.0
        %329 = vmatprep.subr.mxu0 0.0
        %330 = vmatpush1.msra.mxu0 0.0
        %331 = vmatprep.subr.mxu0 0.0
        %332 = vmatpush1.msra.mxu0 0.0
        %333 = vmatprep.subr.mxu0 0.0
        %334 = vmatpush1.msra.mxu0 0.0
        %335 = vmatprep.subr.mxu0 0.0
        %336 = vmatpush1.msra.mxu0 0.0
        %337 = vmatprep.subr.mxu0 0.0
        %338 = vmatpush1.msra.mxu0 0.0
        %339 = vmatprep.subr.mxu0 0.0
        %340 = vmatpush1.msra.mxu0 0.0
        %341 = vmatprep.subr.mxu0 0.0
        %342 = vmatpush1.msra.mxu0 0.0
        %343 = vmatprep.subr.mxu0 0.0
        %344 = vmatpush1.msra.mxu0 0.0
        %345 = vmatprep.subr.mxu0 0.0
        %346 = vmatpush1.msra.mxu0 0.0
        %347 = vmatprep.subr.mxu0 0.0
        %348 = vmatpush1.msra.mxu0 0.0
        %349 = vmatprep.subr.mxu0 0.0
        %350 = vmatpush1.msra.mxu0 0.0
        %351 = vmatprep.subr.mxu0 0.0
        %352 = vmatpush1.msra.mxu0 0.0
        %353 = vmatprep.subr.mxu0 0.0
        %354 = vmatpush1.msra.mxu0 0.0
        %355 = vmatprep.subr.mxu0 0.0
        %356 = vmatpush1.msra.mxu0 0.0
        %357 = vmatprep.subr.mxu0 0.0
        %358 = vmatpush1.msra.mxu0 0.0
        %359 = vmatprep.mubr.f32.mxu0 0.0
        %360 = vmatmul.mubr.f32.gmra.mrb[0].mxu0 %v280
        %v361 = vpop.f32.mrb[0].mxu0
        %v362 = vadd.f32 0.0, %v361
        %v363 = vpop.f32.mrb[0].mxu0
        %364 = vmatprep.mubr.f32.mxu0 0.0
        %365 = vmatmul.mubr.f32.gmra.mrb[0].mxu0 %v283
        %v366 = vpop.f32.mrb[0].mxu0
        %v367 = vadd.f32 0.0, %v366
        %v368 = vpop.f32.mrb[0].mxu0
        %369 = vmatprep.mubr.f32.mxu0 0.0
        %370 = vmatmul.mubr.f32.gmra.mrb[0].mxu0 %v286
        %v371 = vpop.f32.mrb[0].mxu0
        %v372 = vadd.f32 0.0, %v371
        %v373 = vpop.f32.mrb[0].mxu0
        %374 = vmatprep.mubr.f32.mxu0 0.0
        %375 = vmatmul.mubr.f32.gmra.mrb[0].mxu0 %v289
        %v376 = vpop.f32.mrb[0].mxu0
        %v377 = vadd.f32 0.0, %v376
        %v378 = vpop.f32.mrb[0].mxu0
        %379 = vdwg.mxu0
        %380 = vst [vmem:[%s164] sm:$0xff] %v362
        %381 = vst [vmem:[%s164 + $0x8] sm:$0xff] %v367
        %382 = vst [vmem:[%s164 + $0x10] sm:$0xff] %v372
        %383 = vst [vmem:[%s164 + $0x18] sm:$0xff] %v377
        %s384 = sand.u32 %s93, 1
        %s385 = scalar_lea.sflag [#allocation3], %s384
        %s386 = sand.u32 %s93, 1
        %s387 = smul.addr %s386, 32
        %s388 = scalar_lea.vmem [#allocation2], %s387
        // Predicated region
        $region33: #{tpu_custom_call.1} parent=31 // pred_check
          %p389 = pneg %p103
        $region34: #{tpu_custom_call.1} parent=31 // pred_check_branch
          %391 = sbr.rel (%p389) target = $region36
        $region35: #{tpu_custom_call.1} parent=31 // pred_region
          %s392 = smul.u32 4, %s17
          %s394 = ssub.s32 512, 512
          %395 = vsyncadd %s385, %s394
          %s396 = smul.addr %s392, 128
          %s397 = scalar_lea.hbm %s3, %s396
          %s398 = sshll.u32 %s388, 4
          %s399 = int_to_ptr.vmem [resolvable:$true] %s398
          %404 = dma.vmem_to_hbm [thread:$0]  %s399, 512, %s397, %s385, 128, 128, 8
        $region36: #{tpu_custom_call.1} parent=31 // pred_fallthru
          _
      $region32: #{tpu_custom_call.1} parent=5 // pred_fallthru
        _
      %p405 = scmp.le.s32.totalorder 2, %s12
      // Predicated region
      $region37: #{tpu_custom_call.1} parent=5 // pred_check
        %p406 = pneg %p405
      $region38: #{tpu_custom_call.1} parent=5 // pred_check_branch
        %408 = sbr.rel (%p406) target = $region40
      $region39: #{tpu_custom_call.1} parent=5 // pred_region
        %s409 = ssub.s32 %s12, 2
        // Predicated region
        $region41: #{tpu_custom_call.1} parent=39 // pred_check
          %p410 = pneg %p109
        $region42: #{tpu_custom_call.1} parent=39 // pred_check_branch
          %412 = sbr.rel (%p410) target = $region44
        $region43: #{tpu_custom_call.1} parent=39 // pred_region
          %s413 = sand.u32 %s94, 1
          %s414 = scalar_lea.sflag [#allocation3], %s413
          %s415 = sand.u32 %s94, 1
          %s416 = smul.addr %s415, 32
          %s417 = scalar_lea.vmem [#allocation2], %s416
          %418 = dma.done %s414, 512
        $region44: #{tpu_custom_call.1} parent=39 // pred_fallthru
          _
      $region40: #{tpu_custom_call.1} parent=5 // pred_fallthru
        _
    $region6: #{tpu_custom_call.1} parent=1 // loop_footer
      %s16 = sadd.s32 1, %s12
    $region7: #{tpu_custom_call.1} parent=1 // loop_footer_branch
      %11 = sbr.rel target = $region3
    $region8: #{tpu_custom_call.1} parent=1 // loop_exit
      _
    %419 = vsyncpa [#allocation3], 1
    %s420 = scalar_lea.sflag [#allocation3], 1
    %421 = vsyncpa %s420, 1

</llo_original>
